<compile_context>
chip_gen: v6e
topology: v6e:2x2x1
jax: 0.10.0
libtpu: 0.0.40
codegen_flags: <defaults>
</compile_context>

<pallas_src>
import jax
import jax.numpy as jnp
from jax import lax
from jax.experimental import pallas as pl
from jax.experimental.pallas import tpu as pltpu

LANE = 128
SUBLANE = 8
V_TILE_MAX = 2048      # cap on the per-step vocab tile (lane dim of counts)
B_BLK_MAX = 128        # cap on the per-step batch tile (MXU-aligned everywhere)


def _round_up(x, m):
    return ((x + m - 1) // m) * m


def _counts_dtype():
    """bf16 counts on v6e/v7x (bf16 VPU ALUs); f32 on v5e (no bf16 VALU)."""
    try:
        kind = jax.devices()[0].device_kind.lower()
    except Exception:
        kind = ""
    return jnp.float32 if "v5" in kind else jnp.bfloat16


def _make_bow_kernel(seq_len, v_blk, count_dtype):
    def kernel(x_ref, ew_ref, b_ref, out_ref, acc_ref):
        v = pl.program_id(1)

        @pl.when(v == 0)
        def _init():
            acc_ref[...] = jnp.zeros_like(acc_ref)

        ids = x_ref[...]                                    # (B_blk, S) int32
        b_blk = ids.shape[0]
        base = v * v_blk                                    # global vocab offset
        iota_v = lax.broadcasted_iota(jnp.int32, (b_blk, v_blk), 1) + base

        # Bag-of-words counts for the CURRENT vocab tile only; the
        # intermediate is (B_blk, V_blk), never (B, V) or (B, S, V).
        # NOTE: ids outside [0, V) contribute 0 (nn.Embedding would gather
        # garbage / error) -- benign for inference.
        if seq_len <= 16:
            counts = jnp.zeros((b_blk, v_blk), count_dtype)
            for s in range(seq_len):          # short S: fully unrolled VPU loop
                counts = counts + (ids[:, s:s + 1] == iota_v).astype(count_dtype)
        else:
            def body(s, c):
                tok = lax.dynamic_slice_in_dim(ids, s, 1, axis=1)   # (B_blk, 1)
                return c + (tok == iota_v).astype(count_dtype)
            counts = lax.fori_loop(0, seq_len, body,
                                   jnp.zeros((b_blk, v_blk), count_dtype),
                                   unroll=8)

        # Partial MXU matmul for this vocab tile; f32 accumulation in VMEM.
        # counts are exact integers <= S (<= 256), lossless in bf16.
        acc_ref[...] += jnp.dot(counts.astype(jnp.bfloat16), ew_ref[...],
                                preferred_element_type=jnp.float32)

        @pl.when(v == pl.num_programs(1) - 1)
        def _finish():
            # 1/S is already folded into EW; only the bias add remains.
            out_ref[...] = acc_ref[...] + b_ref[...]

    return kernel


def prepare_bow_params(embedding, fc_weight, fc_bias, seq_len):
    """One-time weight fusion: call ONCE per model / seq_len, reuse per call.

      EW = (Emb @ W.T) / S   -> (V_pad, C_pad) bf16, lane-padded C
      b  = bias              -> (1, C_pad) f32

    Folding 1/S into EW keeps the in-kernel counts exact integers and removes
    the per-call scale multiply.
    """
    if seq_len > 256:
        # TODO(synk): split the count range (or keep an f32 table) for S > 256;
        # integer counts above 256 are not exact in bf16.
        raise ValueError("prepare_bow_params: S > 256 unsupported (bf16 counts).")

    V, _ = embedding.shape
    C = fc_weight.shape[0]
    c_pad = _round_up(C, LANE)

    if V <= V_TILE_MAX:
        v_blk, v_pad = V, V
    else:
        v_blk = V_TILE_MAX
        v_pad = _round_up(V, v_blk)

    ew = (embedding @ fc_weight.T) * (1.0 / seq_len)                 # (V, C) f32
    ew = jnp.pad(ew, ((0, v_pad - V), (0, c_pad - C))).astype(jnp.bfloat16)
    b2d = jnp.pad(fc_bias, (0, c_pad - C)).reshape(1, c_pad).astype(jnp.float32)
    return {"ew": ew, "bias": b2d, "seq_len": seq_len,
            "num_classes": C, "v_blk": v_blk}


def bow_forward(x, params):
    """x: (B, S) int32 token ids; params from prepare_bow_params."""
    B, S = x.shape
    assert S == params["seq_len"]
    ew, b2d = params["ew"], params["bias"]
    v_pad, c_pad = ew.shape
    v_blk = params["v_blk"]
    C = params["num_classes"]

    # Pad B to a sublane multiple (>= 8); tile large B so each block is
    # MXU-sized and the B axis can shard across TensorCores (v7x megacore).
    b_pad = _round_up(B, SUBLANE)
    if b_pad > B_BLK_MAX:
        b_blk = B_BLK_MAX
        b_pad = _round_up(b_pad, b_blk)
    else:
        b_blk = b_pad
    if b_pad != B:
        x = jnp.pad(x, ((0, b_pad - B), (0, 0)))   # id-0 rows, sliced off below

    grid = (b_pad // b_blk, v_pad // v_blk)        # (parallel B, reduction V)
    kernel = _make_bow_kernel(S, v_blk, _counts_dtype())

    # Advisory cost estimate.
    flops = 2 * b_pad * S * v_pad + 2 * b_pad * v_pad * c_pad
    bytes_accessed = (b_pad * S * 4 * grid[1]      # ids re-read per V tile
                      + v_pad * c_pad * 2          # fused table (resident over B)
                      + c_pad * 4 + b_pad * c_pad * 4)

    # VMEM budget: double-buffered ids/EW/bias/out blocks + f32 accumulator.
    need = (2 * (b_blk * S * 4 + v_blk * c_pad * 2 + c_pad * 4 + b_blk * c_pad * 4)
            + b_blk * c_pad * 4)
    vmem_limit = int(min(max(2 * need, 32 * 1024 * 1024), 96 * 1024 * 1024))

    logits_pad = pl.pallas_call(
        kernel,
        out_shape=jax.ShapeDtypeStruct((b_pad, c_pad), jnp.float32),
        grid_spec=pltpu.PrefetchScalarGridSpec(
            num_scalar_prefetch=0,
            grid=grid,
            in_specs=[
                pl.BlockSpec((b_blk, S), lambda b, v: (b, 0)),       # token ids
                pl.BlockSpec((v_blk, c_pad), lambda b, v: (v, 0)),   # (Emb@W.T)/S bf16
                pl.BlockSpec((1, c_pad), lambda b, v: (0, 0)),       # bias, resident
            ],
            out_specs=pl.BlockSpec((b_blk, c_pad), lambda b, v: (b, 0)),
            scratch_shapes=[pltpu.VMEM((b_blk, c_pad), jnp.float32)],
        ),
        compiler_params=pltpu.CompilerParams(
            dimension_semantics=("parallel", "arbitrary"),
            vmem_limit_bytes=vmem_limit),
        cost_estimate=pl.CostEstimate(flops=flops, transcendentals=0,
                                      bytes_accessed=bytes_accessed),
    )(x, ew, b2d)

    return logits_pad[:B, :C]


def bag_of_words_classifier(x, embedding, fc_weight, fc_bias):
    """One-shot convenience wrapper.  For repeated inference, call
    prepare_bow_params once and reuse the result with bow_forward."""
    params = prepare_bow_params(embedding, fc_weight, fc_bias, x.shape[1])
    return bow_forward(x, params)


def reference_forward(x, embedding, fc_weight, fc_bias):
    """Pure-JAX f32 reference mirroring the PyTorch module exactly."""
    embedded = jnp.take(embedding, x, axis=0)             # (B, S, E)
    pooled = embedded.mean(axis=1)                         # (B, E)
    return pooled @ fc_weight.T + fc_bias                  # (B, C)


if __name__ == "__main__":
    # Small synthetic shapes consistent with the module.
    B, S = 4, 8            # batch, sequence length
    V, E, C = 64, 32, 20   # vocab_size, embed_dim, num_classes (newsgroups20)

    key = jax.random.PRNGKey(0)
    k_x, k_emb, k_w, k_b = jax.random.split(key, 4)

    x = jax.random.randint(k_x, (B, S), 0, V, dtype=jnp.int32)
    embedding = jax.random.normal(k_emb, (V, E), dtype=jnp.float32)
    fc_weight = jax.random.normal(k_w, (C, E), dtype=jnp.float32) * 0.1
    fc_bias = jax.random.normal(k_b, (C,), dtype=jnp.float32) * 0.1

    # Expensive fusion done ONCE; every forward call is just the kernel.
    params = prepare_bow_params(embedding, fc_weight, fc_bias, S)
    out = bow_forward(x, params)
    out = jax.block_until_ready(out)

    ref = reference_forward(x, embedding, fc_weight, fc_bias)
    assert out.shape == (B, C)
    # Tolerance reflects the bf16 cast of the fused (V, C) table; counts
    # themselves are exact integers in bf16 (S <= 256).
    assert jnp.allclose(out, ref, atol=1e-2, rtol=1e-2), "mismatch vs reference"

    print("KERNEL_OK")
</pallas_src>

<mosaic_0001>
module attributes {stable_mosaic.version = 11 : i64} {
  func.func @kernel(%arg0: i32, %arg1: i32, %arg2: memref<8x8xi32, #tpu.memory_space<vmem>>, %arg3: memref<64x128xbf16, #tpu.memory_space<vmem>>, %arg4: memref<1x128xf32, #tpu.memory_space<vmem>>, %arg5: memref<8x128xf32, #tpu.memory_space<vmem>>, %arg6: memref<8x128xf32, #tpu.memory_space<vmem>>) attributes {dimension_semantics = [#tpu.dimension_semantics<parallel>, #tpu.dimension_semantics<arbitrary>], iteration_bounds = array<i64: 1, 1>, scalar_prefetch = 0 : i64, scratch_operands = 1 : i64, tpu.core_type = #tpu.core_type<tc>, window_params = [{transform_indices = @transform_0, window_bounds = array<i64: 8, 8>}, {transform_indices = @transform_1, window_bounds = array<i64: 64, 128>}, {pipeline_mode = #tpu.pipeline_mode<synchronous>, transform_indices = @transform_2, window_bounds = array<i64: 1, 128>}, {transform_indices = @transform_3, window_bounds = array<i64: 8, 128>}]} {
    %c0_i32 = arith.constant 0 : i32
    %0 = arith.cmpi eq, %arg1, %c0_i32 : i32
    %1 = arith.extui %0 : i1 to i32
    %c0_i32_0 = arith.constant 0 : i32
    %2 = arith.cmpi ne, %1, %c0_i32_0 : i32
    scf.if %2 {
      %cst_11 = arith.constant 0.000000e+00 : f32
      %73 = vector.broadcast %cst_11 : f32 to vector<8x128xf32>
      %c0_12 = arith.constant 0 : index
      %c0_13 = arith.constant 0 : index
      %74 = vector.load %arg6[%c0_12, %c0_13] : memref<8x128xf32, #tpu.memory_space<vmem>>, vector<8x128xf32>
      tpu.vector_store %arg6[%c0_12, %c0_13], %73 {strides = array<i32>} : memref<8x128xf32, #tpu.memory_space<vmem>>, vector<8x128xf32>,
    } else {
    }
    %c0 = arith.constant 0 : index
    %c0_1 = arith.constant 0 : index
    %3 = vector.load %arg2[%c0, %c0_1] : memref<8x8xi32, #tpu.memory_space<vmem>>, vector<8x8xi32>
    %c64_i32 = arith.constant 64 : i32
    %4 = arith.muli %arg1, %c64_i32 : i32
    %5 = tpu.iota {dimensions = array<i32: 1>} : vector<8x64xi32>
    %6 = vector.broadcast %4 : i32 to vector<8x64xi32>
    %7 = arith.addi %5, %6 : vector<8x64xi32>
    %cst = arith.constant 0.000000e+00 : bf16
    %8 = vector.broadcast %cst : bf16 to vector<8x64xbf16>
    %9 = vector.extract_strided_slice %3 {offsets = [0, 0], sizes = [8, 1], strides = [1, 1]} : vector<8x8xi32> to vector<8x1xi32>
    %10 = vector.broadcast %9 : vector<8x1xi32> to vector<8x64xi32>
    %11 = arith.cmpi eq, %10, %7 : vector<8x64xi32>
    %12 = arith.extui %11 : vector<8x64xi1> to vector<8x64xi32>
    %13 = arith.sitofp %12 : vector<8x64xi32> to vector<8x64xf32>
    %14 = arith.truncf %13 : vector<8x64xf32> to vector<8x64xbf16>
    %15 = arith.addf %8, %14 : vector<8x64xbf16>
    %16 = vector.extract_strided_slice %3 {offsets = [0, 1], sizes = [8, 1], strides = [1, 1]} : vector<8x8xi32> to vector<8x1xi32>
    %17 = vector.broadcast %16 : vector<8x1xi32> to vector<8x64xi32>
    %18 = arith.cmpi eq, %17, %7 : vector<8x64xi32>
    %19 = arith.extui %18 : vector<8x64xi1> to vector<8x64xi32>
    %20 = arith.sitofp %19 : vector<8x64xi32> to vector<8x64xf32>
    %21 = arith.truncf %20 : vector<8x64xf32> to vector<8x64xbf16>
    %22 = arith.addf %15, %21 : vector<8x64xbf16>
    %23 = vector.extract_strided_slice %3 {offsets = [0, 2], sizes = [8, 1], strides = [1, 1]} : vector<8x8xi32> to vector<8x1xi32>
    %24 = vector.broadcast %23 : vector<8x1xi32> to vector<8x64xi32>
    %25 = arith.cmpi eq, %24, %7 : vector<8x64xi32>
    %26 = arith.extui %25 : vector<8x64xi1> to vector<8x64xi32>
    %27 = arith.sitofp %26 : vector<8x64xi32> to vector<8x64xf32>
    %28 = arith.truncf %27 : vector<8x64xf32> to vector<8x64xbf16>
    %29 = arith.addf %22, %28 : vector<8x64xbf16>
    %30 = vector.extract_strided_slice %3 {offsets = [0, 3], sizes = [8, 1], strides = [1, 1]} : vector<8x8xi32> to vector<8x1xi32>
    %31 = vector.broadcast %30 : vector<8x1xi32> to vector<8x64xi32>
    %32 = arith.cmpi eq, %31, %7 : vector<8x64xi32>
    %33 = arith.extui %32 : vector<8x64xi1> to vector<8x64xi32>
    %34 = arith.sitofp %33 : vector<8x64xi32> to vector<8x64xf32>
    %35 = arith.truncf %34 : vector<8x64xf32> to vector<8x64xbf16>
    %36 = arith.addf %29, %35 : vector<8x64xbf16>
    %37 = vector.extract_strided_slice %3 {offsets = [0, 4], sizes = [8, 1], strides = [1, 1]} : vector<8x8xi32> to vector<8x1xi32>
    %38 = vector.broadcast %37 : vector<8x1xi32> to vector<8x64xi32>
    %39 = arith.cmpi eq, %38, %7 : vector<8x64xi32>
    %40 = arith.extui %39 : vector<8x64xi1> to vector<8x64xi32>
    %41 = arith.sitofp %40 : vector<8x64xi32> to vector<8x64xf32>
    %42 = arith.truncf %41 : vector<8x64xf32> to vector<8x64xbf16>
    %43 = arith.addf %36, %42 : vector<8x64xbf16>
    %44 = vector.extract_strided_slice %3 {offsets = [0, 5], sizes = [8, 1], strides = [1, 1]} : vector<8x8xi32> to vector<8x1xi32>
    %45 = vector.broadcast %44 : vector<8x1xi32> to vector<8x64xi32>
    %46 = arith.cmpi eq, %45, %7 : vector<8x64xi32>
    %47 = arith.extui %46 : vector<8x64xi1> to vector<8x64xi32>
    %48 = arith.sitofp %47 : vector<8x64xi32> to vector<8x64xf32>
    %49 = arith.truncf %48 : vector<8x64xf32> to vector<8x64xbf16>
    %50 = arith.addf %43, %49 : vector<8x64xbf16>
    %51 = vector.extract_strided_slice %3 {offsets = [0, 6], sizes = [8, 1], strides = [1, 1]} : vector<8x8xi32> to vector<8x1xi32>
    %52 = vector.broadcast %51 : vector<8x1xi32> to vector<8x64xi32>
    %53 = arith.cmpi eq, %52, %7 : vector<8x64xi32>
    %54 = arith.extui %53 : vector<8x64xi1> to vector<8x64xi32>
    %55 = arith.sitofp %54 : vector<8x64xi32> to vector<8x64xf32>
    %56 = arith.truncf %55 : vector<8x64xf32> to vector<8x64xbf16>
    %57 = arith.addf %50, %56 : vector<8x64xbf16>
    %58 = vector.extract_strided_slice %3 {offsets = [0, 7], sizes = [8, 1], strides = [1, 1]} : vector<8x8xi32> to vector<8x1xi32>
    %59 = vector.broadcast %58 : vector<8x1xi32> to vector<8x64xi32>
    %60 = arith.cmpi eq, %59, %7 : vector<8x64xi32>
    %61 = arith.extui %60 : vector<8x64xi1> to vector<8x64xi32>
    %62 = arith.sitofp %61 : vector<8x64xi32> to vector<8x64xf32>
    %63 = arith.truncf %62 : vector<8x64xf32> to vector<8x64xbf16>
    %64 = arith.addf %57, %63 : vector<8x64xbf16>
    %c0_2 = arith.constant 0 : index
    %c0_3 = arith.constant 0 : index
    %65 = vector.load %arg6[%c0_2, %c0_3] : memref<8x128xf32, #tpu.memory_space<vmem>>, vector<8x128xf32>
    %c0_4 = arith.constant 0 : index
    %c0_5 = arith.constant 0 : index
    %66 = vector.load %arg3[%c0_4, %c0_5] : memref<64x128xbf16, #tpu.memory_space<vmem>>, vector<64x128xbf16>
    %cst_6 = arith.constant dense<0.000000e+00> : vector<8x128xf32>
    %67 = tpu.matmul %64, %66, %cst_6 {dimension_numbers = #tpu.dot_dimension_numbers<[1], [0], [0], [1], [0, 0, 1, 1], [], []>} : vector<8x64xbf16>, vector<64x128xbf16>, vector<8x128xf32> -> vector<8x128xf32>
    %68 = arith.addf %65, %67 : vector<8x128xf32>
    %c0_7 = arith.constant 0 : index
    %c0_8 = arith.constant 0 : index
    %69 = vector.load %arg6[%c0_7, %c0_8] : memref<8x128xf32, #tpu.memory_space<vmem>>, vector<8x128xf32>
    tpu.vector_store %arg6[%c0_7, %c0_8], %68 {strides = array<i32>} : memref<8x128xf32, #tpu.memory_space<vmem>>, vector<8x128xf32>,
    %c0_i32_9 = arith.constant 0 : i32
    %70 = arith.cmpi eq, %arg1, %c0_i32_9 : i32
    %71 = arith.extui %70 : i1 to i32
    %c0_i32_10 = arith.constant 0 : i32
    %72 = arith.cmpi ne, %71, %c0_i32_10 : i32
    scf.if %72 {
      %c0_11 = arith.constant 0 : index
      %c0_12 = arith.constant 0 : index
      %73 = vector.load %arg6[%c0_11, %c0_12] : memref<8x128xf32, #tpu.memory_space<vmem>>, vector<8x128xf32>
      %c0_13 = arith.constant 0 : index
      %c0_14 = arith.constant 0 : index
      %74 = vector.load %arg4[%c0_13, %c0_14] : memref<1x128xf32, #tpu.memory_space<vmem>>, vector<1x128xf32>
      %75 = vector.broadcast %74 : vector<1x128xf32> to vector<8x128xf32>
      %76 = arith.addf %73, %75 : vector<8x128xf32>
      %c0_15 = arith.constant 0 : index
      %c0_16 = arith.constant 0 : index
      %77 = vector.load %arg5[%c0_15, %c0_16] : memref<8x128xf32, #tpu.memory_space<vmem>>, vector<8x128xf32>
      tpu.vector_store %arg5[%c0_15, %c0_16], %76 {strides = array<i32>} : memref<8x128xf32, #tpu.memory_space<vmem>>, vector<8x128xf32>,
    } else {
    }
    return
  }
  func.func @transform_0(%arg0: i32, %arg1: i32) -> (i32, i32) {
    %c0_i32 = arith.constant 0 : i32
    %c0_i32_0 = arith.constant 0 : i32
    return %arg0, %c0_i32 : i32, i32
  }
  func.func @transform_1(%arg0: i32, %arg1: i32) -> (i32, i32) {
    %c0_i32 = arith.constant 0 : i32
    %c0_i32_0 = arith.constant 0 : i32
    return %arg1, %c0_i32 : i32, i32
  }
  func.func @transform_2(%arg0: i32, %arg1: i32) -> (i32, i32) {
    %c0_i32 = arith.constant 0 : i32
    %c0_i32_0 = arith.constant 0 : i32
    %c0_i32_1 = arith.constant 0 : i32
    return %c0_i32, %c0_i32_0 : i32, i32
  }
  func.func @transform_3(%arg0: i32, %arg1: i32) -> (i32, i32) {
    %c0_i32 = arith.constant 0 : i32
    %c0_i32_0 = arith.constant 0 : i32
    return %arg0, %c0_i32 : i32, i32
  }
}

</mosaic_0001>

<llo_original>
// kernel: tpu_custom_call.1
$region0: #{tpu_custom_call.1}
  #allocation0 [shape = 'u32[]', space=smem, size = 0x4, offset = 0x4, fixed_abs, tag = 'smem constant byte address 0x4 - core index']
  #allocation1 [shape = 'u32[144,128]{1,0:T(1,128)}', space=vmem, size = 0x12000, scoped, tag = 'internal scratch']
  #allocation2 [shape = 'f32[8,128]{1,0:T(8,128)}', space=vmem, size = 0x1000, scoped, tag = 'scratch operand']
  %s0 = inlined_call_operand.hbm [shape: s32[8,8], index: 0, kind: input, shape index: {}]
  %s1 = inlined_call_operand.hbm [shape: bf16[64,128], index: 1, kind: input, shape index: {}]
  %s2 = inlined_call_operand.vmem [shape: f32[1,128], index: 2, kind: input, shape index: {}]
  %s3 = inlined_call_operand.hbm [shape: f32[8,128], index: 3, kind: output, shape index: {}]
  %s4 = sld [smem:[#allocation0]]
  $region38: #{tpu_custom_call.1} parent=0
    _
  %s6 = ssub.s32 1, %s4
  %s7 = scalar_select 0, %s6, %s4
  $region1: #{tpu_custom_call.1} parent=0
    #allocation3 [shape = 'u8[4096]{0}', space=vmem, size = 0x1000, scoped, tag = 'input window, operand 0, single buffered']
    #allocation4 [shape = 's32[1]{0}', space=sflag, size = 0x4, scoped, tag = 'scoped memory for tpu_custom_call.1']
    #allocation5 [shape = 's32[1]{0}', space=sflag, size = 0x4, scoped, tag = 'scoped memory for tpu_custom_call.1']
    #allocation6 [shape = 'u8[16384]{0}', space=vmem, size = 0x4000, scoped, tag = 'input window, operand 1, single buffered']
    #allocation7 [shape = 's32[1]{0}', space=sflag, size = 0x4, scoped, tag = 'scoped memory for tpu_custom_call.1']
    #allocation8 [shape = 'u8[4096]{0}', space=vmem, size = 0x1000, scoped, tag = 'output window, operand 0, single buffered']
    %8 = vsyncpa [#allocation4], 0
    %9 = vsyncpa [#allocation7], 0
    %10 = vsyncpa [#allocation5], 0
    // Predicated region
    $region2: #{tpu_custom_call.1} parent=1 // pred_check
      _
    $region3: #{tpu_custom_call.1} parent=1 // pred_check_branch
      %12 = sbr.rel (0) target = $region5
    $region4: #{tpu_custom_call.1} parent=1 // pred_region
      %s14 = ssub.s32 128, 128
      %15 = vsyncadd [#allocation4], %s14
      %s17 = sshll.u32 [#allocation3], 4
      %s18 = int_to_ptr.vmem [resolvable:$true] %s17
      %20 = dma.hbm_to_vmem [thread:$0]  %s0, 128, %s18, [#allocation4]
    $region5: #{tpu_custom_call.1} parent=1 // pred_fallthru
      _
    // Predicated region
    $region6: #{tpu_custom_call.1} parent=1 // pred_check
      _
    $region7: #{tpu_custom_call.1} parent=1 // pred_check_branch
      %22 = sbr.rel (0) target = $region9
    $region8: #{tpu_custom_call.1} parent=1 // pred_region
      %s24 = ssub.s32 512, 512
      %25 = vsyncadd [#allocation7], %s24
      %s26 = sshll.u32 [#allocation6], 4
      %s27 = int_to_ptr.vmem [resolvable:$true] %s26
      %32 = dma.hbm_to_vmem [thread:$0]  %s1, 512, %s27, [#allocation7], 64, 64, 4
    $region9: #{tpu_custom_call.1} parent=1 // pred_fallthru
      _
    // Predicated region
    $region10: #{tpu_custom_call.1} parent=1 // pred_check
      _
    $region11: #{tpu_custom_call.1} parent=1 // pred_check_branch
      %34 = sbr.rel (0) target = $region13
    $region12: #{tpu_custom_call.1} parent=1 // pred_region
      _
    $region13: #{tpu_custom_call.1} parent=1 // pred_fallthru
      _
    // Predicated region
    $region14: #{tpu_custom_call.1} parent=1 // pred_check
      _
    $region15: #{tpu_custom_call.1} parent=1 // pred_check_branch
      %36 = sbr.rel (0) target = $region17
    $region16: #{tpu_custom_call.1} parent=1 // pred_region
      %37 = dma.done [#allocation4], 128
    $region17: #{tpu_custom_call.1} parent=1 // pred_fallthru
      _
    // Predicated region
    $region18: #{tpu_custom_call.1} parent=1 // pred_check
      _
    $region19: #{tpu_custom_call.1} parent=1 // pred_check_branch
      %39 = sbr.rel (0) target = $region21
    $region20: #{tpu_custom_call.1} parent=1 // pred_region
      %40 = dma.done [#allocation7], 512
    $region21: #{tpu_custom_call.1} parent=1 // pred_fallthru
      _
    %p42 = scmp.eq.s32.totalorder 0, 0
    // Predicated region
    $region22: #{tpu_custom_call.1} parent=1 // pred_check
      %p43 = pneg %p42
    $region23: #{tpu_custom_call.1} parent=1 // pred_check_branch
      %45 = sbr.rel (%p43) target = $region25
    $region24: #{tpu_custom_call.1} parent=1 // pred_region
      %46 = vst [vmem:[#allocation2] sm:$0xff] 0.0
    $region25: #{tpu_custom_call.1} parent=1 // pred_fallthru
      _
    %v47 = vld [vmem:[#allocation3] sm:$0xff]
    %s48 = smul.u32 0, 64
    %v49 = vlaneseq
    %v50 = vand.u32 %v49, 127
    %v51 = vstv %s48
    %v52 = vadd.s32 %v50, %v51
    %53 = vset.pattern.permute.xlu0 0
    %54 = vperm.xlu0 %53, %v47
    %v55 = vpop.permute.xlu0 %54
    %vm56 = vcmp.eq.s32.totalorder %v55, %v52
    %v57 = vsel %vm56, 1, 0
    %v58 = vcvt.s32.f32 %v57
    %v59 = vpack.c.bf16 %v58, %v58
    %v60 = vadd.bf16 %v59, 0
    %61 = vset.pattern.permute.xlu0 1
    %62 = vperm.xlu0 %61, %v47
    %v63 = vpop.permute.xlu0 %62
    %vm64 = vcmp.eq.s32.totalorder %v63, %v52
    %v65 = vsel %vm64, 1, 0
    %v66 = vcvt.s32.f32 %v65
    %v67 = vpack.c.bf16 %v66, %v66
    %v68 = vadd.bf16 %v60, %v67
    %69 = vset.pattern.permute.xlu0 2
    %70 = vperm.xlu0 %69, %v47
    %v71 = vpop.permute.xlu0 %70
    %vm72 = vcmp.eq.s32.totalorder %v71, %v52
    %v73 = vsel %vm72, 1, 0
    %v74 = vcvt.s32.f32 %v73
    %v75 = vpack.c.bf16 %v74, %v74
    %v76 = vadd.bf16 %v68, %v75
    %77 = vset.pattern.permute.xlu0 3
    %78 = vperm.xlu0 %77, %v47
    %v79 = vpop.permute.xlu0 %78
    %vm80 = vcmp.eq.s32.totalorder %v79, %v52
    %v81 = vsel %vm80, 1, 0
    %v82 = vcvt.s32.f32 %v81
    %v83 = vpack.c.bf16 %v82, %v82
    %v84 = vadd.bf16 %v76, %v83
    %85 = vset.pattern.permute.xlu0 4
    %86 = vperm.xlu0 %85, %v47
    %v87 = vpop.permute.xlu0 %86
    %vm88 = vcmp.eq.s32.totalorder %v87, %v52
    %v89 = vsel %vm88, 1, 0
    %v90 = vcvt.s32.f32 %v89
    %v91 = vpack.c.bf16 %v90, %v90
    %v92 = vadd.bf16 %v84, %v91
    %93 = vset.pattern.permute.xlu0 5
    %94 = vperm.xlu0 %93, %v47
    %v95 = vpop.permute.xlu0 %94
    %vm96 = vcmp.eq.s32.totalorder %v95, %v52
    %v97 = vsel %vm96, 1, 0
    %v98 = vcvt.s32.f32 %v97
    %v99 = vpack.c.bf16 %v98, %v98
    %v100 = vadd.bf16 %v92, %v99
    %101 = vset.pattern.permute.xlu0 6
    %102 = vperm.xlu0 %101, %v47
    %v103 = vpop.permute.xlu0 %102
    %vm104 = vcmp.eq.s32.totalorder %v103, %v52
    %v105 = vsel %vm104, 1, 0
    %v106 = vcvt.s32.f32 %v105
    %v107 = vpack.c.bf16 %v106, %v106
    %v108 = vadd.bf16 %v100, %v107
    %109 = vset.pattern.permute.xlu0 7
    %110 = vperm.xlu0 %109, %v47
    %v111 = vpop.permute.xlu0 %110
    %vm112 = vcmp.eq.s32.totalorder %v111, %v52
    %v113 = vsel %vm112, 1, 0
    %v114 = vcvt.s32.f32 %v113
    %v115 = vpack.c.bf16 %v114, %v114
    %v116 = vadd.bf16 %v108, %v115
    %v117 = vld [vmem:[#allocation2] sm:$0xff]
    %v118 = vld [vmem:[#allocation6] sm:$0xf]
    %v119 = vld [vmem:[#allocation6 + $0x4] sm:$0xf]
    %v120 = vld [vmem:[#allocation6 + $0x8] sm:$0xf]
    %v121 = vld [vmem:[#allocation6 + $0xc] sm:$0xf]
    %v122 = vld [vmem:[#allocation6 + $0x10] sm:$0xf]
    %v123 = vld [vmem:[#allocation6 + $0x14] sm:$0xf]
    %v124 = vld [vmem:[#allocation6 + $0x18] sm:$0xf]
    %v125 = vld [vmem:[#allocation6 + $0x1c] sm:$0xf]
    %v134 = vunpack.c.l.b16 %v118
    %v135 = vunpack.c.l.b16 %v119
    %v136 = vunpack.c.l.b16 %v120
    %v137 = vunpack.c.l.b16 %v121
    %v138 = vunpack.c.l.b16 %v122
    %v139 = vunpack.c.l.b16 %v123
    %v140 = vunpack.c.l.b16 %v124
    %v141 = vunpack.c.l.b16 %v125
    %v142 = vpack.c.b16 %v135, %v134
    %v143 = vpack.c.b16 %v137, %v136
    %v144 = vpack.c.b16 %v139, %v138
    %v145 = vpack.c.b16 %v141, %v140
    %vm150 = vcmask 523264
    %v152 = vsel %vm150, %v116, 0
    %154 = vmatprep.subr.bf16.mxu0 0
    %155 = vmatpush1.bf16.msra.mxu0 0
    %156 = vmatprep.subr.bf16.mxu0 0
    %157 = vmatpush1.bf16.msra.mxu0 0
    %158 = vmatprep.subr.bf16.mxu0 0
    %159 = vmatpush1.bf16.msra.mxu0 0
    %160 = vmatprep.subr.bf16.mxu0 0
    %161 = vmatpush1.bf16.msra.mxu0 0
    %162 = vmatprep.subr.bf16.mxu0 0
    %163 = vmatpush1.bf16.msra.mxu0 %v145
    %164 = vmatprep.subr.bf16.mxu0 0
    %165 = vmatpush1.bf16.msra.mxu0 %v144
    %166 = vmatprep.subr.bf16.mxu0 0
    %167 = vmatpush1.bf16.msra.mxu0 %v143
    %168 = vmatprep.subr.bf16.mxu0 0
    %169 = vmatpush1.bf16.msra.mxu0 %v142
    %170 = vmatprep.subr.bf16.mxu0 0
    %171 = vmatpush2.bf16.msra.mxu0 0
    %172 = vmatprep.subr.bf16.mxu0 0
    %173 = vmatpush2.bf16.msra.mxu0 0
    %174 = vmatprep.subr.bf16.mxu0 0
    %175 = vmatpush2.bf16.msra.mxu0 0
    %176 = vmatprep.subr.bf16.mxu0 0
    %177 = vmatpush2.bf16.msra.mxu0 0
    %178 = vmatprep.subr.bf16.mxu0 0
    %179 = vmatpush2.bf16.msra.mxu0 0
    %180 = vmatprep.subr.bf16.mxu0 0
    %181 = vmatpush2.bf16.msra.mxu0 0
    %182 = vmatprep.subr.bf16.mxu0 0
    %183 = vmatpush2.bf16.msra.mxu0 0
    %184 = vmatprep.subr.bf16.mxu0 0
    %185 = vmatpush2.bf16.msra.mxu0 0
    %186 = vmatprep.mubr.bf16.mxu0 0
    %187 = vmatmul.mubr.bf16.gmra.mxu0 %v152
    %v188 = vpop.f32.mrf.mxu0
    %v189 = vadd.f32 0.0, %v188
    %v190 = vpop.f32.mrf.mxu0
    %v191 = vpop.f32.mrf.mxu0
    %v192 = vpop.f32.mrf.mxu0
    %193 = vdwg.mxu0
    %v194 = vadd.f32 %v117, %v189
    %195 = vst [vmem:[#allocation2] sm:$0xff] %v194
    // Predicated region
    $region26: #{tpu_custom_call.1} parent=1 // pred_check
      %p196 = pneg %p42
    $region27: #{tpu_custom_call.1} parent=1 // pred_check_branch
      %198 = sbr.rel (%p196) target = $region29
    $region28: #{tpu_custom_call.1} parent=1 // pred_region
      %v199 = vld [vmem:[#allocation2] sm:$0xff]
      %v200 = vld [vmem:[%s2] sm:$0x1]
      %v202 = vlaneseq
      %v203 = vshrl.u32 %v202, 7
      %v204 = vsub.s32 0, %v203
      %v205 = vrot.slane %v200, %v204
      %v207 = vadd.f32 %v199, %v205
      %208 = vst [vmem:[#allocation8] sm:$0xff] %v207
    $region29: #{tpu_custom_call.1} parent=1 // pred_fallthru
      _
    // Predicated region
    $region30: #{tpu_custom_call.1} parent=1 // pred_check
      _
    $region31: #{tpu_custom_call.1} parent=1 // pred_check_branch
      %210 = sbr.rel (0) target = $region33
    $region32: #{tpu_custom_call.1} parent=1 // pred_region
      %s212 = ssub.s32 128, 128
      %213 = vsyncadd [#allocation5], %s212
      %s215 = sshll.u32 [#allocation8], 4
      %s216 = int_to_ptr.vmem [resolvable:$true] %s215
      %218 = dma.vmem_to_hbm [thread:$0]  %s216, 128, %s3, [#allocation5]
    $region33: #{tpu_custom_call.1} parent=1 // pred_fallthru
      _
    // Predicated region
    $region34: #{tpu_custom_call.1} parent=1 // pred_check
      _
    $region35: #{tpu_custom_call.1} parent=1 // pred_check_branch
      %220 = sbr.rel (0) target = $region37
    $region36: #{tpu_custom_call.1} parent=1 // pred_region
      %221 = dma.done [#allocation5], 128
    $region37: #{tpu_custom_call.1} parent=1 // pred_fallthru
      _
    %222 = vsyncpa [#allocation4], 1
    %223 = vsyncpa [#allocation7], 1
    %224 = vsyncpa [#allocation5], 1

</llo_original>
